<compile_context>
chip_gen: v5e
topology: v5e:2x2
jax: 0.10.0
libtpu: 0.0.40
codegen_flags: <defaults>
</compile_context>

<pallas_src>
import jax
import jax.numpy as jnp
from jax.experimental import pallas as pl
from jax.experimental.pallas import tpu as pltpu


def _round_up(n, m):
    return ((n + m - 1) // m) * m


def _num_tensorcores():
    """Best-effort TensorCores-per-chip (v7x: 2, v5e/v6e: 1).  Defaults to 1."""
    try:
        info = pltpu.get_tpu_info()
        for name in ("num_cores", "core_count", "num_tensorcores", "tensorcore_count"):
            n = getattr(info, name, None)
            if n:
                return int(n)
    except Exception:
        pass
    try:
        n = getattr(jax.devices()[0], "num_cores", None)
        if n:
            return int(n)
    except Exception:
        pass
    return 1


def classifier_kernel(x_ref, w1_ref, b1_ref, w2_ref, b2_ref, w3_ref, b3_ref, o_ref):
    # Layer 1: Linear + ReLU.  (tile_p, P*D) @ (P*D, P*H) on the MXU, f32 accumulation.
    h1 = jnp.dot(x_ref[...], w1_ref[...], preferred_element_type=jnp.float32)
    h1 = jnp.maximum(h1 + b1_ref[...], 0.0)

    # Layer 2: Linear + ReLU.  Cast LHS to the weight dtype so the optional
    # bf16 path keeps both MXU operands narrow (no-op for f32 weights).
    h2 = jnp.dot(h1.astype(w2_ref.dtype), w2_ref[...],
                 preferred_element_type=jnp.float32)
    h2 = jnp.maximum(h2 + b2_ref[...], 0.0)

    # Output layer: block (P*H, P) matrix, one logit lane per packed sample.
    logits = jnp.dot(h2.astype(w3_ref.dtype), w3_ref[...],
                     preferred_element_type=jnp.float32) + b3_ref[...]

    # Classifier activation: sigmoid.  exp runs on the EUP; exact reciprocal is
    # kept for f32-reference agreement (approx=True would also be valid).
    o_ref[...] = pl.reciprocal(1.0 + jnp.exp(-logits)).astype(o_ref.dtype)


def classifier_forward(x, params, *, batch_tile=8192, weight_dtype=None):
    """activation(base_model(x)) as a single Pallas kernel.

    x: (B, D) float32; returns (B, 1) float32 in [0, 1].
    weight_dtype: optionally jnp.bfloat16 (recommended on v6e/v7x) to halve the
                  x/W HBM stream; accumulation and elementwise math stay f32.
    """
    w1, b1, w2, b2, w3, b3 = params
    B, D = x.shape
    H = w1.shape[1]

    # --- Lane packing --------------------------------------------------------
    # Pack P samples per 128-lane row so the MXU / VPU see 128-wide operands.
    P = max(1, 128 // max(D, H, 1))
    Dp, Hp = P * D, P * H

    B_pad = _round_up(B, P)
    if B_pad != B:
        x = jnp.pad(x, ((0, B_pad - B), (0, 0)))   # padded rows are discarded below
    Bp = B_pad // P
    xp = jnp.reshape(x, (Bp, Dp))                  # free row-major reshape

    eye = jnp.eye(P, dtype=jnp.float32)
    w1b = jnp.kron(eye, w1.astype(jnp.float32))                         # (P*D, P*H)
    w2b = jnp.kron(eye, w2.astype(jnp.float32))                         # (P*H, P*H)
    w3b = jnp.kron(eye, jnp.reshape(w3, (H, 1)).astype(jnp.float32))    # (P*H, P)
    b1t = jnp.tile(jnp.reshape(b1, (1, H)).astype(jnp.float32), (1, P))  # (1, P*H)
    b2t = jnp.tile(jnp.reshape(b2, (1, H)).astype(jnp.float32), (1, P))  # (1, P*H)
    b3t = jnp.tile(jnp.reshape(b3, (1, 1)).astype(jnp.float32), (1, P))  # (1, P)

    # Optional narrow-precision input/weight path (keeps f32 accumulation).
    if weight_dtype is not None:
        xp = xp.astype(weight_dtype)
        w1b = w1b.astype(weight_dtype)
        w2b = w2b.astype(weight_dtype)
        w3b = w3b.astype(weight_dtype)

    # --- Batch tiling (generation-aware) -------------------------------------
    row_align = 16 if weight_dtype in (jnp.bfloat16, jnp.float16) else 8
    tile_p = max(1, batch_tile // P)
    tile_p = max(row_align, (tile_p // row_align) * row_align)

    # Only shrink the tile for megacore sharding when the chip actually has
    # more than one TensorCore (v7x); on v5e/v6e the grid is a serial loop.
    ncores = _num_tensorcores()
    if ncores > 1:
        target_steps = 2 * ncores            # >= 2 steps/core keeps per-core overlap
        if Bp >= target_steps * row_align:
            tile_p = min(tile_p, _round_up(pl.cdiv(Bp, target_steps), row_align))
    if tile_p >= Bp:
        tile_p = Bp                          # single full block (always a legal shape)

    grid = (pl.cdiv(Bp, tile_p),)

    out = pl.pallas_call(
        classifier_kernel,
        out_shape=jax.ShapeDtypeStruct((Bp, P), jnp.float32),
        grid=grid,
        in_specs=[
            pl.BlockSpec((tile_p, Dp), lambda i: (i, 0)),   # packed x tile
            pl.BlockSpec((Dp, Hp), lambda i: (0, 0)),       # W1 block-diag (resident)
            pl.BlockSpec((1, Hp), lambda i: (0, 0)),        # b1 tiled
            pl.BlockSpec((Hp, Hp), lambda i: (0, 0)),       # W2 block-diag (resident)
            pl.BlockSpec((1, Hp), lambda i: (0, 0)),        # b2 tiled
            pl.BlockSpec((Hp, P), lambda i: (0, 0)),        # W3 block matrix
            pl.BlockSpec((1, P), lambda i: (0, 0)),         # b3 tiled
        ],
        out_specs=pl.BlockSpec((tile_p, P), lambda i: (i, 0)),
        compiler_params=pltpu.CompilerParams(
            dimension_semantics=("parallel",),
        ),
    )(xp, w1b, b1t, w2b, b2t, w3b, b3t)

    out = jnp.reshape(out, (B_pad, 1))
    if B_pad != B:
        out = out[:B]
    return out


def init_params(key, in_dim, hidden_dim):
    """Deterministic synthetic parameter init (uniform fan-in scaling, like nn.Linear)."""
    k1, k2, k3, k4, k5, k6 = jax.random.split(key, 6)

    def lin(kw, kb, fan_in, fan_out):
        bound = 1.0 / jnp.sqrt(fan_in)
        w = jax.random.uniform(kw, (fan_in, fan_out), jnp.float32, -bound, bound)
        b = jax.random.uniform(kb, (1, fan_out), jnp.float32, -bound, bound)
        return w, b

    w1, b1 = lin(k1, k2, in_dim, hidden_dim)
    w2, b2 = lin(k3, k4, hidden_dim, hidden_dim)
    w3, b3 = lin(k5, k6, hidden_dim, 1)
    return (w1, b1, w2, b2, w3, b3)


def reference_forward(x, params):
    """Pure-JAX reference for correctness checking."""
    w1, b1, w2, b2, w3, b3 = params
    h1 = jnp.maximum(x @ w1 + b1, 0.0)
    h2 = jnp.maximum(h1 @ w2 + b2, 0.0)
    return jax.nn.sigmoid(h2 @ w3 + b3)


# TODO(synk): Classifier's training/IO utilities (compute_loss, weighted_loss,
# save/load) are outside the forward pass and are not implemented as kernels.

if __name__ == "__main__":
    key = jax.random.PRNGKey(0)
    k_x, k_p = jax.random.split(key)

    in_dim, hidden = 32, 32
    params = init_params(k_p, in_dim, hidden)

    # Case 1: divisible batch with a deliberately small tile -> multi-step grid
    # (exercises the pipelined / "parallel" batch axis path).
    x = jax.random.normal(k_x, (256, in_dim), jnp.float32)
    out = jax.block_until_ready(classifier_forward(x, params, batch_tile=64))
    ref = reference_forward(x, params)
    assert out.shape == (256, 1)
    assert bool(jnp.all(jnp.isfinite(out)))
    assert jnp.allclose(out, ref, atol=1e-5, rtol=1e-5)

    # Case 2: ragged batch (not a multiple of the packing factor) -> exercises
    # the pad + masked-edge-tile path with the default large tile.
    x2 = jax.random.normal(k_x, (203, in_dim), jnp.float32)
    out2 = jax.block_until_ready(classifier_forward(x2, params))
    ref2 = reference_forward(x2, params)
    assert out2.shape == (203, 1)
    assert bool(jnp.all(jnp.isfinite(out2)))
    assert jnp.allclose(out2, ref2, atol=1e-5, rtol=1e-5)

    # Case 3: bf16 input/weight path (recommended on v6e/v7x for the HBM-bound
    # x stream); accumulation is f32, so tolerance is loosened accordingly.
    x3 = jax.random.normal(k_x, (512, in_dim), jnp.float32)
    out3 = jax.block_until_ready(
        classifier_forward(x3, params, weight_dtype=jnp.bfloat16))
    ref3 = reference_forward(x3, params)
    assert out3.shape == (512, 1)
    assert bool(jnp.all(jnp.isfinite(out3)))
    assert jnp.allclose(out3, ref3, atol=3e-2, rtol=3e-2)

    print("KERNEL_OK")
</pallas_src>

<mosaic_0001>
module attributes {stable_mosaic.version = 11 : i64} {
  func.func @classifier_kernel(%arg0: i32, %arg1: memref<16x128xf32, #tpu.memory_space<vmem>>, %arg2: memref<128x128xf32, #tpu.memory_space<vmem>>, %arg3: memref<1x128xf32, #tpu.memory_space<vmem>>, %arg4: memref<128x128xf32, #tpu.memory_space<vmem>>, %arg5: memref<1x128xf32, #tpu.memory_space<vmem>>, %arg6: memref<128x4xf32, #tpu.memory_space<vmem>>, %arg7: memref<1x4xf32, #tpu.memory_space<vmem>>, %arg8: memref<16x4xf32, #tpu.memory_space<vmem>>) attributes {dimension_semantics = [#tpu.dimension_semantics<parallel>], iteration_bounds = array<i64: 4>, scalar_prefetch = 0 : i64, scratch_operands = 0 : i64, tpu.core_type = #tpu.core_type<tc>, window_params = [{transform_indices = @transform_0, window_bounds = array<i64: 16, 128>}, {pipeline_mode = #tpu.pipeline_mode<synchronous>, transform_indices = @transform_1, window_bounds = array<i64: 128, 128>}, {pipeline_mode = #tpu.pipeline_mode<synchronous>, transform_indices = @transform_2, window_bounds = array<i64: 1, 128>}, {pipeline_mode = #tpu.pipeline_mode<synchronous>, transform_indices = @transform_3, window_bounds = array<i64: 128, 128>}, {pipeline_mode = #tpu.pipeline_mode<synchronous>, transform_indices = @transform_4, window_bounds = array<i64: 1, 128>}, {pipeline_mode = #tpu.pipeline_mode<synchronous>, transform_indices = @transform_5, window_bounds = array<i64: 128, 4>}, {pipeline_mode = #tpu.pipeline_mode<synchronous>, transform_indices = @transform_6, window_bounds = array<i64: 1, 4>}, {transform_indices = @transform_7, window_bounds = array<i64: 16, 4>}]} {
    %c0 = arith.constant 0 : index
    %c0_0 = arith.constant 0 : index
    %0 = vector.load %arg1[%c0, %c0_0] : memref<16x128xf32, #tpu.memory_space<vmem>>, vector<16x128xf32>
    %c0_1 = arith.constant 0 : index
    %c0_2 = arith.constant 0 : index
    %1 = vector.load %arg2[%c0_1, %c0_2] : memref<128x128xf32, #tpu.memory_space<vmem>>, vector<128x128xf32>
    %cst = arith.constant dense<0.000000e+00> : vector<16x128xf32>
    %2 = tpu.matmul %0, %1, %cst {dimension_numbers = #tpu.dot_dimension_numbers<[1], [0], [0], [1], [0, 0, 1, 1], [], []>} : vector<16x128xf32>, vector<128x128xf32>, vector<16x128xf32> -> vector<16x128xf32>
    %c0_3 = arith.constant 0 : index
    %c0_4 = arith.constant 0 : index
    %3 = vector.load %arg3[%c0_3, %c0_4] : memref<1x128xf32, #tpu.memory_space<vmem>>, vector<1x128xf32>
    %4 = vector.broadcast %3 : vector<1x128xf32> to vector<16x128xf32>
    %5 = arith.addf %2, %4 : vector<16x128xf32>
    %cst_5 = arith.constant 0.000000e+00 : f32
    %6 = vector.broadcast %cst_5 : f32 to vector<16x128xf32>
    %7 = arith.maximumf %5, %6 : vector<16x128xf32>
    %c0_6 = arith.constant 0 : index
    %c0_7 = arith.constant 0 : index
    %8 = vector.load %arg4[%c0_6, %c0_7] : memref<128x128xf32, #tpu.memory_space<vmem>>, vector<128x128xf32>
    %cst_8 = arith.constant dense<0.000000e+00> : vector<16x128xf32>
    %9 = tpu.matmul %7, %8, %cst_8 {dimension_numbers = #tpu.dot_dimension_numbers<[1], [0], [0], [1], [0, 0, 1, 1], [], []>} : vector<16x128xf32>, vector<128x128xf32>, vector<16x128xf32> -> vector<16x128xf32>
    %c0_9 = arith.constant 0 : index
    %c0_10 = arith.constant 0 : index
    %10 = vector.load %arg5[%c0_9, %c0_10] : memref<1x128xf32, #tpu.memory_space<vmem>>, vector<1x128xf32>
    %11 = vector.broadcast %10 : vector<1x128xf32> to vector<16x128xf32>
    %12 = arith.addf %9, %11 : vector<16x128xf32>
    %cst_11 = arith.constant 0.000000e+00 : f32
    %13 = vector.broadcast %cst_11 : f32 to vector<16x128xf32>
    %14 = arith.maximumf %12, %13 : vector<16x128xf32>
    %c0_12 = arith.constant 0 : index
    %c0_13 = arith.constant 0 : index
    %15 = vector.load %arg6[%c0_12, %c0_13] : memref<128x4xf32, #tpu.memory_space<vmem>>, vector<128x4xf32>
    %cst_14 = arith.constant dense<0.000000e+00> : vector<16x4xf32>
    %16 = tpu.matmul %14, %15, %cst_14 {dimension_numbers = #tpu.dot_dimension_numbers<[1], [0], [0], [1], [0, 0, 1, 1], [], []>} : vector<16x128xf32>, vector<128x4xf32>, vector<16x4xf32> -> vector<16x4xf32>
    %c0_15 = arith.constant 0 : index
    %c0_16 = arith.constant 0 : index
    %17 = vector.load %arg7[%c0_15, %c0_16] : memref<1x4xf32, #tpu.memory_space<vmem>>, vector<1x4xf32>
    %18 = vector.broadcast %17 : vector<1x4xf32> to vector<16x4xf32>
    %19 = arith.addf %16, %18 : vector<16x4xf32>
    %cst_17 = arith.constant 0.000000e+00 : f32
    %20 = vector.broadcast %cst_17 : f32 to vector<16x4xf32>
    %21 = arith.subf %20, %19 : vector<16x4xf32>
    %22 = math.exp %21 : vector<16x4xf32>
    %cst_18 = arith.constant 1.000000e+00 : f32
    %23 = vector.broadcast %cst_18 : f32 to vector<16x4xf32>
    %24 = arith.addf %23, %22 : vector<16x4xf32>
    %25 = tpu.reciprocal %24 : vector<16x4xf32> -> vector<16x4xf32>
    %c0_19 = arith.constant 0 : index
    %c0_20 = arith.constant 0 : index
    %26 = vector.load %arg8[%c0_19, %c0_20] : memref<16x4xf32, #tpu.memory_space<vmem>>, vector<16x4xf32>
    tpu.vector_store %arg8[%c0_19, %c0_20], %25 {strides = array<i32>} : memref<16x4xf32, #tpu.memory_space<vmem>>, vector<16x4xf32>,
    return
  }
  func.func @transform_0(%arg0: i32) -> (i32, i32) {
    %c0_i32 = arith.constant 0 : i32
    %c0_i32_0 = arith.constant 0 : i32
    return %arg0, %c0_i32 : i32, i32
  }
  func.func @transform_1(%arg0: i32) -> (i32, i32) {
    %c0_i32 = arith.constant 0 : i32
    %c0_i32_0 = arith.constant 0 : i32
    %c0_i32_1 = arith.constant 0 : i32
    return %c0_i32, %c0_i32_0 : i32, i32
  }
  func.func @transform_2(%arg0: i32) -> (i32, i32) {
    %c0_i32 = arith.constant 0 : i32
    %c0_i32_0 = arith.constant 0 : i32
    %c0_i32_1 = arith.constant 0 : i32
    return %c0_i32, %c0_i32_0 : i32, i32
  }
  func.func @transform_3(%arg0: i32) -> (i32, i32) {
    %c0_i32 = arith.constant 0 : i32
    %c0_i32_0 = arith.constant 0 : i32
    %c0_i32_1 = arith.constant 0 : i32
    return %c0_i32, %c0_i32_0 : i32, i32
  }
  func.func @transform_4(%arg0: i32) -> (i32, i32) {
    %c0_i32 = arith.constant 0 : i32
    %c0_i32_0 = arith.constant 0 : i32
    %c0_i32_1 = arith.constant 0 : i32
    return %c0_i32, %c0_i32_0 : i32, i32
  }
  func.func @transform_5(%arg0: i32) -> (i32, i32) {
    %c0_i32 = arith.constant 0 : i32
    %c0_i32_0 = arith.constant 0 : i32
    %c0_i32_1 = arith.constant 0 : i32
    return %c0_i32, %c0_i32_0 : i32, i32
  }
  func.func @transform_6(%arg0: i32) -> (i32, i32) {
    %c0_i32 = arith.constant 0 : i32
    %c0_i32_0 = arith.constant 0 : i32
    %c0_i32_1 = arith.constant 0 : i32
    return %c0_i32, %c0_i32_0 : i32, i32
  }
  func.func @transform_7(%arg0: i32) -> (i32, i32) {
    %c0_i32 = arith.constant 0 : i32
    %c0_i32_0 = arith.constant 0 : i32
    return %arg0, %c0_i32 : i32, i32
  }
}

</mosaic_0001>

<llo_original>
// kernel: tpu_custom_call.1
$region0: #{tpu_custom_call.1}
  #allocation0 [shape = 'u32[]', space=smem, size = 0x4, offset = 0x4, fixed_abs, tag = 'smem constant byte address 0x4 - core index']
  #allocation1 [shape = 'u32[72,128]{1,0:T(1,128)}', space=vmem, size = 0x9000, scoped, tag = 'internal scratch']
  %s0 = inlined_call_operand.hbm [shape: f32[64,128], index: 0, kind: input, shape index: {}]
  %s1 = inlined_call_operand.vmem [shape: f32[128,128], index: 1, kind: input, shape index: {}]
  %s2 = inlined_call_operand.vmem [shape: f32[1,128], index: 2, kind: input, shape index: {}]
  %s3 = inlined_call_operand.hbm [shape: f32[128,128], index: 3, kind: input, shape index: {}]
  %s4 = inlined_call_operand.vmem [shape: f32[1,128], index: 4, kind: input, shape index: {}]
  %s5 = inlined_call_operand.vmem [shape: f32[128,4], index: 5, kind: input, shape index: {}]
  %s6 = inlined_call_operand.vmem [shape: f32[1,4], index: 6, kind: input, shape index: {}]
  %s7 = inlined_call_operand.vmem [shape: f32[64,4], index: 7, kind: output, shape index: {}]
  %s8 = sld [smem:[#allocation0]]
  $region69: #{tpu_custom_call.1} parent=0
    _
  %s10 = ssub.s32 1, %s8
  %s11 = scalar_select 0, %s10, %s8
  $region1: #{tpu_custom_call.1} parent=0
    #allocation2 [shape = 'u8[16384]{0}', space=vmem, size = 0x4000, scoped, tag = 'input window, operand 0']
    #allocation3 [shape = 's32[2]{0}', space=sflag, size = 0x8, scoped, tag = 'scoped memory for tpu_custom_call.1']
    #allocation4 [shape = 'u8[65536]{0}', space=vmem, size = 0x10000, scoped, tag = 'input window, operand 3, single buffered']
    #allocation5 [shape = 's32[1]{0}', space=sflag, size = 0x4, scoped, tag = 'scoped memory for tpu_custom_call.1']
    %12 = vsyncpa [#allocation3], 0
    %s13 = scalar_lea.sflag [#allocation3], 1
    %14 = vsyncpa %s13, 0
    %15 = vsyncpa [#allocation5], 0
    loop: start=0, step=1, limit=6
    $region2: #{tpu_custom_call.1} parent=1 // loop_pre_header
      _
    $region3: #{tpu_custom_call.1} parent=1 // loop_header
      %s17 = sphi 0, %s21
      %p18 = scmp.ge.s32.totalorder %s17, 6
      %s27 = sphi 0, %s29
      %s30 = sphi 0, %s27
      %s31 = sphi 0, %s30
      %s47 = sphi 0, %s31
      %s51 = sphi 0, %s51
      %s53 = sphi 0, %s51
      %s54 = sphi 0, %s53
      %s68 = sphi 0, %s54
      %s72 = sphi 0, %s72
      %s74 = sphi 0, %s72
      %s75 = sphi 0, %s74
      %s89 = sphi 0, %s75
      %s93 = sphi 0, %s93
      %s95 = sphi 0, %s93
      %s96 = sphi 0, %s95
      %s110 = sphi 0, %s96
      %s114 = sphi 0, %s114
      %s116 = sphi 0, %s114
      %s117 = sphi 0, %s116
      %s131 = sphi 0, %s117
      %s135 = sphi 0, %s135
      %s137 = sphi 0, %s135
      %s138 = sphi 0, %s137
      %s152 = sphi 0, %s138
      %s156 = sphi 0, %s156
      %s158 = sphi 0, %s156
      %s159 = sphi 0, %s158
      %s173 = sphi 0, %s159
      %s179 = sphi 0, %s181
      %s182 = sphi 0, %s179
      %s183 = sphi 0, %s182
      %s199 = sphi 0, %s183
    $region4: #{tpu_custom_call.1} parent=1 // loop_header_branch
      %20 = sbr.rel (%p18) target = $region8
    $region5: #{tpu_custom_call.1} parent=1 // loop_body
      %s22 = ssub.s32 %s17, 1
      %s23 = ssub.s32 %s17, 2
      %s24 = sadd.s32 %s17, 1
      %s25 = ssub.s32 %s17, %s24
      %p26 = scmp.eq.s32.totalorder %s25, 0
      %s28 = sadd.s32 %s27, 1
      %s29 = scalar_select %p26, %s27, %s28
      %p32 = pneg %p26
      %p33 = scmp.eq.s32.totalorder %s17, 3
      %p34 = por %p32, %p33
      %p35 = scmp.ne.s32.totalorder %s27, %s30
      %p36 = scmp.eq.s32.totalorder %s17, 0
      %p37 = por %p35, %p36
      %p38 = scmp.ne.s32.totalorder %s27, %s30
      %p39 = scmp.eq.s32.totalorder %s22, 3
      %p40 = por %p38, %p39
      %p41 = scmp.ne.s32.totalorder %s30, %s31
      %p42 = scmp.eq.s32.totalorder %s22, 0
      %p43 = por %p41, %p42
      %p44 = scmp.ne.s32.totalorder %s30, %s31
      %p45 = scmp.eq.s32.totalorder %s23, 3
      %p46 = por %p44, %p45
      %p48 = scmp.ne.s32.totalorder %s31, %s47
      %p49 = scmp.eq.s32.totalorder %s23, 0
      %p50 = por %p48, %p49
      %s52 = sadd.s32 %s51, 1
      %p55 = scmp.eq.s32.totalorder %s17, 3
      %p56 = scmp.ne.s32.totalorder %s51, %s53
      %p57 = scmp.eq.s32.totalorder %s17, 0
      %p58 = por %p56, %p57
      %p59 = scmp.ne.s32.totalorder %s51, %s53
      %p60 = scmp.eq.s32.totalorder %s22, 3
      %p61 = por %p59, %p60
      %p62 = scmp.ne.s32.totalorder %s53, %s54
      %p63 = scmp.eq.s32.totalorder %s22, 0
      %p64 = por %p62, %p63
      %p65 = scmp.ne.s32.totalorder %s53, %s54
      %p66 = scmp.eq.s32.totalorder %s23, 3
      %p67 = por %p65, %p66
      %p69 = scmp.ne.s32.totalorder %s54, %s68
      %p70 = scmp.eq.s32.totalorder %s23, 0
      %p71 = por %p69, %p70
      %s73 = sadd.s32 %s72, 1
      %p76 = scmp.eq.s32.totalorder %s17, 3
      %p77 = scmp.ne.s32.totalorder %s72, %s74
      %p78 = scmp.eq.s32.totalorder %s17, 0
      %p79 = por %p77, %p78
      %p80 = scmp.ne.s32.totalorder %s72, %s74
      %p81 = scmp.eq.s32.totalorder %s22, 3
      %p82 = por %p80, %p81
      %p83 = scmp.ne.s32.totalorder %s74, %s75
      %p84 = scmp.eq.s32.totalorder %s22, 0
      %p85 = por %p83, %p84
      %p86 = scmp.ne.s32.totalorder %s74, %s75
      %p87 = scmp.eq.s32.totalorder %s23, 3
      %p88 = por %p86, %p87
      %p90 = scmp.ne.s32.totalorder %s75, %s89
      %p91 = scmp.eq.s32.totalorder %s23, 0
      %p92 = por %p90, %p91
      %s94 = sadd.s32 %s93, 1
      %p97 = scmp.eq.s32.totalorder %s17, 3
      %p98 = scmp.ne.s32.totalorder %s93, %s95
      %p99 = scmp.eq.s32.totalorder %s17, 0
      %p100 = por %p98, %p99
      %p101 = scmp.ne.s32.totalorder %s93, %s95
      %p102 = scmp.eq.s32.totalorder %s22, 3
      %p103 = por %p101, %p102
      %p104 = scmp.ne.s32.totalorder %s95, %s96
      %p105 = scmp.eq.s32.totalorder %s22, 0
      %p106 = por %p104, %p105
      %p107 = scmp.ne.s32.totalorder %s95, %s96
      %p108 = scmp.eq.s32.totalorder %s23, 3
      %p109 = por %p107, %p108
      %p111 = scmp.ne.s32.totalorder %s96, %s110
      %p112 = scmp.eq.s32.totalorder %s23, 0
      %p113 = por %p111, %p112
      %s115 = sadd.s32 %s114, 1
      %p118 = scmp.eq.s32.totalorder %s17, 3
      %p119 = scmp.ne.s32.totalorder %s114, %s116
      %p120 = scmp.eq.s32.totalorder %s17, 0
      %p121 = por %p119, %p120
      %p122 = scmp.ne.s32.totalorder %s114, %s116
      %p123 = scmp.eq.s32.totalorder %s22, 3
      %p124 = por %p122, %p123
      %p125 = scmp.ne.s32.totalorder %s116, %s117
      %p126 = scmp.eq.s32.totalorder %s22, 0
      %p127 = por %p125, %p126
      %p128 = scmp.ne.s32.totalorder %s116, %s117
      %p129 = scmp.eq.s32.totalorder %s23, 3
      %p130 = por %p128, %p129
      %p132 = scmp.ne.s32.totalorder %s117, %s131
      %p133 = scmp.eq.s32.totalorder %s23, 0
      %p134 = por %p132, %p133
      %s136 = sadd.s32 %s135, 1
      %p139 = scmp.eq.s32.totalorder %s17, 3
      %p140 = scmp.ne.s32.totalorder %s135, %s137
      %p141 = scmp.eq.s32.totalorder %s17, 0
      %p142 = por %p140, %p141
      %p143 = scmp.ne.s32.totalorder %s135, %s137
      %p144 = scmp.eq.s32.totalorder %s22, 3
      %p145 = por %p143, %p144
      %p146 = scmp.ne.s32.totalorder %s137, %s138
      %p147 = scmp.eq.s32.totalorder %s22, 0
      %p148 = por %p146, %p147
      %p149 = scmp.ne.s32.totalorder %s137, %s138
      %p150 = scmp.eq.s32.totalorder %s23, 3
      %p151 = por %p149, %p150
      %p153 = scmp.ne.s32.totalorder %s138, %s152
      %p154 = scmp.eq.s32.totalorder %s23, 0
      %p155 = por %p153, %p154
      %s157 = sadd.s32 %s156, 1
      %p160 = scmp.eq.s32.totalorder %s17, 3
      %p161 = scmp.ne.s32.totalorder %s156, %s158
      %p162 = scmp.eq.s32.totalorder %s17, 0
      %p163 = por %p161, %p162
      %p164 = scmp.ne.s32.totalorder %s156, %s158
      %p165 = scmp.eq.s32.totalorder %s22, 3
      %p166 = por %p164, %p165
      %p167 = scmp.ne.s32.totalorder %s158, %s159
      %p168 = scmp.eq.s32.totalorder %s22, 0
      %p169 = por %p167, %p168
      %p170 = scmp.ne.s32.totalorder %s158, %s159
      %p171 = scmp.eq.s32.totalorder %s23, 3
      %p172 = por %p170, %p171
      %p174 = scmp.ne.s32.totalorder %s159, %s173
      %p175 = scmp.eq.s32.totalorder %s23, 0
      %p176 = por %p174, %p175
      %s177 = ssub.s32 %s17, %s24
      %p178 = scmp.eq.s32.totalorder %s177, 0
      %s180 = sadd.s32 %s179, 1
      %s181 = scalar_select %p178, %s179, %s180
      %p184 = pneg %p178
      %p185 = scmp.eq.s32.totalorder %s17, 3
      %p186 = por %p184, %p185
      %p187 = scmp.ne.s32.totalorder %s179, %s182
      %p188 = scmp.eq.s32.totalorder %s17, 0
      %p189 = por %p187, %p188
      %p190 = scmp.ne.s32.totalorder %s179, %s182
      %p191 = scmp.eq.s32.totalorder %s22, 3
      %p192 = por %p190, %p191
      %p193 = scmp.ne.s32.totalorder %s182, %s183
      %p194 = scmp.eq.s32.totalorder %s22, 0
      %p195 = por %p193, %p194
      %p196 = scmp.ne.s32.totalorder %s182, %s183
      %p197 = scmp.eq.s32.totalorder %s23, 3
      %p198 = por %p196, %p197
      %p200 = scmp.ne.s32.totalorder %s183, %s199
      %p201 = scmp.eq.s32.totalorder %s23, 0
      %p202 = por %p200, %p201
      %p203 = scmp.le.s32.totalorder 1, %s17
      %p204 = scmp.lt.s32.totalorder %s17, 5
      %p205 = pnand %p203, %p204
      %p206 = pneg %p205
      // Predicated region
      $region9: #{tpu_custom_call.1} parent=5 // pred_check
        _
      $region10: #{tpu_custom_call.1} parent=5 // pred_check_branch
        %208 = sbr.rel (%p205) target = $region12
      $region11: #{tpu_custom_call.1} parent=5 // pred_region
        %s209 = ssub.s32 %s17, 1
        // Predicated region
        $region13: #{tpu_custom_call.1} parent=11 // pred_check
          %p210 = pneg %p64
        $region14: #{tpu_custom_call.1} parent=11 // pred_check_branch
          %212 = sbr.rel (%p210) target = $region16
        $region15: #{tpu_custom_call.1} parent=11 // pred_region
          _
        $region16: #{tpu_custom_call.1} parent=11 // pred_fallthru
          _
        // Predicated region
        $region17: #{tpu_custom_call.1} parent=11 // pred_check
          %p213 = pneg %p85
        $region18: #{tpu_custom_call.1} parent=11 // pred_check_branch
          %215 = sbr.rel (%p213) target = $region20
        $region19: #{tpu_custom_call.1} parent=11 // pred_region
          _
        $region20: #{tpu_custom_call.1} parent=11 // pred_fallthru
          _
        // Predicated region
        $region21: #{tpu_custom_call.1} parent=11 // pred_check
          %p216 = pneg %p106
        $region22: #{tpu_custom_call.1} parent=11 // pred_check_branch
          %218 = sbr.rel (%p216) target = $region24
        $region23: #{tpu_custom_call.1} parent=11 // pred_region
          %220 = vsyncadd [#allocation5], 0
          %s221 = sshll.u32 %s3, 4
          %s222 = int_to_ptr.hbm [resolvable:$true] %s221
          %s223 = sshll.u32 [#allocation4], 4
          %s224 = int_to_ptr.vmem [resolvable:$true] %s223
          %229 = dma.hbm_to_vmem [thread:$0]  %s222, 2048, %s224, [#allocation5], 128, 128, 8
        $region24: #{tpu_custom_call.1} parent=11 // pred_fallthru
          _
        // Predicated region
        $region25: #{tpu_custom_call.1} parent=11 // pred_check
          %p230 = pneg %p127
        $region26: #{tpu_custom_call.1} parent=11 // pred_check_branch
          %232 = sbr.rel (%p230) target = $region28
        $region27: #{tpu_custom_call.1} parent=11 // pred_region
          _
        $region28: #{tpu_custom_call.1} parent=11 // pred_fallthru
          _
        // Predicated region
        $region29: #{tpu_custom_call.1} parent=11 // pred_check
          %p233 = pneg %p148
        $region30: #{tpu_custom_call.1} parent=11 // pred_check_branch
          %235 = sbr.rel (%p233) target = $region32
        $region31: #{tpu_custom_call.1} parent=11 // pred_region
          _
        $region32: #{tpu_custom_call.1} parent=11 // pred_fallthru
          _
        // Predicated region
        $region33: #{tpu_custom_call.1} parent=11 // pred_check
          %p236 = pneg %p169
        $region34: #{tpu_custom_call.1} parent=11 // pred_check_branch
          %238 = sbr.rel (%p236) target = $region36
        $region35: #{tpu_custom_call.1} parent=11 // pred_region
          _
        $region36: #{tpu_custom_call.1} parent=11 // pred_fallthru
          _
      $region12: #{tpu_custom_call.1} parent=5 // pred_fallthru
        _
      %p239 = scmp.lt.s32.totalorder %s17, 4
      // Predicated region
      $region37: #{tpu_custom_call.1} parent=5 // pred_check
        %p240 = pneg %p239
      $region38: #{tpu_custom_call.1} parent=5 // pred_check_branch
        %242 = sbr.rel (%p240) target = $region40
      $region39: #{tpu_custom_call.1} parent=5 // pred_region
        // Predicated region
        $region41: #{tpu_custom_call.1} parent=39 // pred_check
          %p243 = pneg %p37
        $region42: #{tpu_custom_call.1} parent=39 // pred_check_branch
          %245 = sbr.rel (%p243) target = $region44
        $region43: #{tpu_custom_call.1} parent=39 // pred_region
          %s246 = sand.u32 %s27, 1
          %s247 = scalar_lea.sflag [#allocation3], %s246
          %s248 = sand.u32 %s27, 1
          %s249 = smul.addr %s248, 16
          %s250 = scalar_lea.vmem [#allocation2], %s249
          %s251 = smul.u32 2, %s17
          %253 = vsyncadd %s247, 0
          %s254 = smul.addr %s251, 8
          %s255 = scalar_lea.hbm %s0, %s254
          %s256 = sshll.u32 %s255, 4
          %s257 = int_to_ptr.hbm [resolvable:$true] %s256
          %s258 = sshll.u32 %s250, 4
          %s259 = int_to_ptr.vmem [resolvable:$true] %s258
          %264 = dma.hbm_to_vmem [thread:$0]  %s257, 256, %s259, %s247, 128, 128, 8
        $region44: #{tpu_custom_call.1} parent=39 // pred_fallthru
          _
      $region40: #{tpu_custom_call.1} parent=5 // pred_fallthru
        _
      %p265 = scmp.le.s32.totalorder 1, %s17
      %p266 = scmp.lt.s32.totalorder %s17, 5
      %p267 = pnand %p265, %p266
      %p268 = pneg %p267
      // Predicated region
      $region45: #{tpu_custom_call.1} parent=5 // pred_check
        _
      $region46: #{tpu_custom_call.1} parent=5 // pred_check_branch
        %270 = sbr.rel (%p267) target = $region48
      $region47: #{tpu_custom_call.1} parent=5 // pred_region
        %s271 = ssub.s32 %s17, 1
        %s272 = sand.u32 %s30, 1
        %s273 = scalar_lea.sflag [#allocation3], %s272
        %s274 = sand.u32 %s30, 1
        %s275 = smul.addr %s274, 16
        %s276 = scalar_lea.vmem [#allocation2], %s275
        // Predicated region
        $region49: #{tpu_custom_call.1} parent=47 // pred_check
          %p277 = pneg %p43
        $region50: #{tpu_custom_call.1} parent=47 // pred_check_branch
          %279 = sbr.rel (%p277) target = $region52
        $region51: #{tpu_custom_call.1} parent=47 // pred_region
          %281 = dma.done %s273, 256
        $region52: #{tpu_custom_call.1} parent=47 // pred_fallthru
          _
        // Predicated region
        $region53: #{tpu_custom_call.1} parent=47 // pred_check
          %p282 = pneg %p106
        $region54: #{tpu_custom_call.1} parent=47 // pred_check_branch
          %284 = sbr.rel (%p282) target = $region56
        $region55: #{tpu_custom_call.1} parent=47 // pred_region
          %286 = dma.done [#allocation5], 2048
        $region56: #{tpu_custom_call.1} parent=47 // pred_fallthru
          _
        %s287 = sand.u32 %s30, 1
        %s288 = scalar_lea.sflag [#allocation3], %s287
        %s289 = sand.u32 %s30, 1
        %s290 = smul.addr %s289, 16
        %s291 = scalar_lea.vmem [#allocation2], %s290
        %p292 = pneg %p43
        %p293 = pneg %p40
        %p294 = pneg %p64
        %p295 = pneg %p61
        %p296 = pneg %p85
        %p297 = pneg %p82
        %p298 = pneg %p106
        %p299 = pneg %p103
        %p300 = pneg %p127
        %p301 = pneg %p124
        %p302 = pneg %p148
        %p303 = pneg %p145
        %p304 = pneg %p169
        %p305 = pneg %p166
        %p306 = pneg %p195
        %p307 = pneg %p192
        %s308 = smul.u32 2, %s22
        %p309 = scmp.lt.s32.totalorder %s308, 7
        %s310 = scalar_select %p309, %s308, 7
        %s311 = smul.addr %s310, 8
        %s312 = scalar_lea.vmem %s7, %s311
        %s313 = smul.u32 2, %s22
        %s314 = smul.u32 2, %s22
        %p315 = scmp.lt.s32.totalorder %s314, 7
        %s316 = scalar_select %p315, %s314, 7
        %s317 = smul.addr %s316, 8
        %s318 = scalar_lea.vmem %s7, %s317
        %s319 = smul.u32 2, %s22
        %v320 = vld [vmem:[%s276] sm:$0xff]
        %v321 = vld [vmem:[%s276 + $0x8] sm:$0xff]
        %v322 = vld [vmem:[%s1] sm:$0xff]
        %v323 = vld [vmem:[%s1 + $0x8] sm:$0xff]
        %v324 = vld [vmem:[%s1 + $0x10] sm:$0xff]
        %v325 = vld [vmem:[%s1 + $0x18] sm:$0xff]
        %v326 = vld [vmem:[%s1 + $0x20] sm:$0xff]
        %v327 = vld [vmem:[%s1 + $0x28] sm:$0xff]
        %v328 = vld [vmem:[%s1 + $0x30] sm:$0xff]
        %v329 = vld [vmem:[%s1 + $0x38] sm:$0xff]
        %v330 = vld [vmem:[%s1 + $0x40] sm:$0xff]
        %v331 = vld [vmem:[%s1 + $0x48] sm:$0xff]
        %v332 = vld [vmem:[%s1 + $0x50] sm:$0xff]
        %v333 = vld [vmem:[%s1 + $0x58] sm:$0xff]
        %v334 = vld [vmem:[%s1 + $0x60] sm:$0xff]
        %v335 = vld [vmem:[%s1 + $0x68] sm:$0xff]
        %v336 = vld [vmem:[%s1 + $0x70] sm:$0xff]
        %v337 = vld [vmem:[%s1 + $0x78] sm:$0xff]
        %v338 = vld [vmem:[%s2] sm:$0x1]
        %v340 = vperm.slane %v338, 0
        %342 = vmatpush.msra.mxu0 %v337
        %343 = vmatpush.msra.mxu0 %v336
        %344 = vmatpush.msra.mxu0 %v335
        %345 = vmatpush.msra.mxu0 %v334
        %346 = vmatpush.msra.mxu0 %v333
        %347 = vmatpush.msra.mxu0 %v332
        %348 = vmatpush.msra.mxu0 %v331
        %349 = vmatpush.msra.mxu0 %v330
        %350 = vmatpush.msra.mxu0 %v329
        %351 = vmatpush.msra.mxu0 %v328
        %352 = vmatpush.msra.mxu0 %v327
        %353 = vmatpush.msra.mxu0 %v326
        %354 = vmatpush.msra.mxu0 %v325
        %355 = vmatpush.msra.mxu0 %v324
        %356 = vmatpush.msra.mxu0 %v323
        %357 = vmatpush.msra.mxu0 %v322
        %358 = vmatmul.f32.gmra.mxu0 %v320
        %v359 = vpop.f32.mrf.mxu0
        %v360 = vadd.f32 %v340, %v359
        %361 = vmatmul.f32.gmra.mxu0 %v321
        %v362 = vpop.f32.mrf.mxu0
        %v363 = vadd.f32 %v340, %v362
        %364 = vdwg.mxu0
        %v365 = vmax.f32 %v360, 0.0
        %v366 = vmax.f32 %v363, 0.0
        %v367 = vld [vmem:[#allocation4] sm:$0xff]
        %v368 = vld [vmem:[#allocation4 + $0x8] sm:$0xff]
        %v369 = vld [vmem:[#allocation4 + $0x10] sm:$0xff]
        %v370 = vld [vmem:[#allocation4 + $0x18] sm:$0xff]
        %v371 = vld [vmem:[#allocation4 + $0x20] sm:$0xff]
        %v372 = vld [vmem:[#allocation4 + $0x28] sm:$0xff]
        %v373 = vld [vmem:[#allocation4 + $0x30] sm:$0xff]
        %v374 = vld [vmem:[#allocation4 + $0x38] sm:$0xff]
        %v375 = vld [vmem:[#allocation4 + $0x40] sm:$0xff]
        %v376 = vld [vmem:[#allocation4 + $0x48] sm:$0xff]
        %v377 = vld [vmem:[#allocation4 + $0x50] sm:$0xff]
        %v378 = vld [vmem:[#allocation4 + $0x58] sm:$0xff]
        %v379 = vld [vmem:[#allocation4 + $0x60] sm:$0xff]
        %v380 = vld [vmem:[#allocation4 + $0x68] sm:$0xff]
        %v381 = vld [vmem:[#allocation4 + $0x70] sm:$0xff]
        %v382 = vld [vmem:[#allocation4 + $0x78] sm:$0xff]
        %v383 = vld [vmem:[%s4] sm:$0x1]
        %v385 = vperm.slane %v383, 0
        %387 = vmatpush.msra.mxu0 %v382
        %388 = vmatpush.msra.mxu0 %v381
        %389 = vmatpush.msra.mxu0 %v380
        %390 = vmatpush.msra.mxu0 %v379
        %391 = vmatpush.msra.mxu0 %v378
        %392 = vmatpush.msra.mxu0 %v377
        %393 = vmatpush.msra.mxu0 %v376
        %394 = vmatpush.msra.mxu0 %v375
        %395 = vmatpush.msra.mxu0 %v374
        %396 = vmatpush.msra.mxu0 %v373
        %397 = vmatpush.msra.mxu0 %v372
        %398 = vmatpush.msra.mxu0 %v371
        %399 = vmatpush.msra.mxu0 %v370
        %400 = vmatpush.msra.mxu0 %v369
        %401 = vmatpush.msra.mxu0 %v368
        %402 = vmatpush.msra.mxu0 %v367
        %403 = vmatmul.f32.gmra.mxu0 %v365
        %v404 = vpop.f32.mrf.mxu0
        %v405 = vadd.f32 %v385, %v404
        %406 = vmatmul.f32.gmra.mxu0 %v366
        %v407 = vpop.f32.mrf.mxu0
        %v408 = vadd.f32 %v385, %v407
        %409 = vdwg.mxu0
        %v410 = vmax.f32 %v405, 0.0
        %v411 = vmax.f32 %v408, 0.0
        %v412 = vld [vmem:[%s5] sm:$0xff]
        %v413 = vld [vmem:[%s5 + $0x8] sm:$0xff]
        %v414 = vld [vmem:[%s5 + $0x10] sm:$0xff]
        %v415 = vld [vmem:[%s5 + $0x18] sm:$0xff]
        %v416 = vld [vmem:[%s5 + $0x20] sm:$0xff]
        %v417 = vld [vmem:[%s5 + $0x28] sm:$0xff]
        %v418 = vld [vmem:[%s5 + $0x30] sm:$0xff]
        %v419 = vld [vmem:[%s5 + $0x38] sm:$0xff]
        %v420 = vld [vmem:[%s5 + $0x40] sm:$0xff]
        %v421 = vld [vmem:[%s5 + $0x48] sm:$0xff]
        %v422 = vld [vmem:[%s5 + $0x50] sm:$0xff]
        %v423 = vld [vmem:[%s5 + $0x58] sm:$0xff]
        %v424 = vld [vmem:[%s5 + $0x60] sm:$0xff]
        %v425 = vld [vmem:[%s5 + $0x68] sm:$0xff]
        %v426 = vld [vmem:[%s5 + $0x70] sm:$0xff]
        %v427 = vld [vmem:[%s5 + $0x78] sm:$0xff]
        %v428 = vld [vmem:[%s6] sm:$0x1]
        %v430 = vperm.slane %v428, 0
        %432 = vmatpush.msra.mxu0 %v427
        %433 = vmatpush.msra.mxu0 %v426
        %434 = vmatpush.msra.mxu0 %v425
        %435 = vmatpush.msra.mxu0 %v424
        %436 = vmatpush.msra.mxu0 %v423
        %437 = vmatpush.msra.mxu0 %v422
        %438 = vmatpush.msra.mxu0 %v421
        %439 = vmatpush.msra.mxu0 %v420
        %440 = vmatpush.msra.mxu0 %v419
        %441 = vmatpush.msra.mxu0 %v418
        %442 = vmatpush.msra.mxu0 %v417
        %443 = vmatpush.msra.mxu0 %v416
        %444 = vmatpush.msra.mxu0 %v415
        %445 = vmatpush.msra.mxu0 %v414
        %446 = vmatpush.msra.mxu0 %v413
        %447 = vmatpush.msra.mxu0 %v412
        %448 = vmatmul.f32.gmra.mxu0 %v410
        %v449 = vpop.f32.mrf.mxu0
        %v450 = vadd.f32 %v430, %v449
        %451 = vmatmul.f32.gmra.mxu0 %v411
        %v452 = vpop.f32.mrf.mxu0
        %v453 = vadd.f32 %v430, %v452
        %454 = vdwg.mxu0
        %v455 = vsub.f32 0.0, %v450
        %v456 = vsub.f32 0.0, %v453
        %v457 = vmul.f32 %v455, 1.442695
        %v458 = vpow.pop %v457
        %v459 = vmul.f32 %v456, 1.442695
        %v460 = vpow.pop %v459
        %v461 = vadd.f32 %v458, 1.0
        %v462 = vadd.f32 %v460, 1.0
        %v463 = vrcp.pop %v461
        %v464 = vmul.f32 %v461, %v463
        %v465 = vsub.f32 1.0, %v464
        %v466 = vmul.f32 %v463, %v465
        %v467 = vadd.f32 %v463, %v466
        %vm468 = vweird.f32 %v461
        %vm469 = vweird.f32 %v463
        %vm470 = vmor %vm468, %vm469
        %v471 = vsel %vm470, %v463, %v467
        %v472 = vand.u32 2147483647, %v461
        %vm473 = vcmp.eq.f32.partialorder %v472, 8.507059e+37
        %v474 = vand.u32 %v461, 2147483648
        %v475 = vor.u32 1.1754944e-38, %v474
        %v476 = vsel %vm473, %v475, %v471
        %v477 = vrcp.pop %v462
        %v478 = vmul.f32 %v462, %v477
        %v479 = vsub.f32 1.0, %v478
        %v480 = vmul.f32 %v477, %v479
        %v481 = vadd.f32 %v477, %v480
        %vm482 = vweird.f32 %v462
        %vm483 = vweird.f32 %v477
        %vm484 = vmor %vm482, %vm483
        %v485 = vsel %vm484, %v477, %v481
        %v486 = vand.u32 2147483647, %v462
        %vm487 = vcmp.eq.f32.partialorder %v486, 8.507059e+37
        %v488 = vand.u32 %v462, 2147483648
        %v489 = vor.u32 1.1754944e-38, %v488
        %v490 = vsel %vm487, %v489, %v485
        %vm491 = vcmask 31744
        %492 = vst.msk [vmem:[%s318] sm:$0xff] %vm491, %v476
        %493 = vst.msk [vmem:[%s318 + $0x8] sm:$0xff] %vm491, %v490
        %s494 = smul.u32 2, %s22
        %p495 = scmp.lt.s32.totalorder %s494, 7
        %s496 = scalar_select %p495, %s494, 7
        %s497 = smul.addr %s496, 8
        %s498 = scalar_lea.vmem %s7, %s497
        // Predicated region
        $region57: #{tpu_custom_call.1} parent=47 // pred_check
          %p499 = pneg %p192
        $region58: #{tpu_custom_call.1} parent=47 // pred_check_branch
          %501 = sbr.rel (%p499) target = $region60
        $region59: #{tpu_custom_call.1} parent=47 // pred_region
          %s502 = smul.u32 2, %s22
        $region60: #{tpu_custom_call.1} parent=47 // pred_fallthru
          _
      $region48: #{tpu_custom_call.1} parent=5 // pred_fallthru
        _
      %p503 = scmp.le.s32.totalorder 2, %s17
      // Predicated region
      $region61: #{tpu_custom_call.1} parent=5 // pred_check
        %p504 = pneg %p503
      $region62: #{tpu_custom_call.1} parent=5 // pred_check_branch
        %506 = sbr.rel (%p504) target = $region64
      $region63: #{tpu_custom_call.1} parent=5 // pred_region
        %s507 = ssub.s32 %s17, 2
        // Predicated region
        $region65: #{tpu_custom_call.1} parent=63 // pred_check
          %p508 = pneg %p198
        $region66: #{tpu_custom_call.1} parent=63 // pred_check_branch
          %510 = sbr.rel (%p508) target = $region68
        $region67: #{tpu_custom_call.1} parent=63 // pred_region
          %s511 = smul.u32 2, %s23
          %p512 = scmp.lt.s32.totalorder %s511, 7
          %s513 = scalar_select %p512, %s511, 7
          %s514 = smul.addr %s513, 8
          %s515 = scalar_lea.vmem %s7, %s514
        $region68: #{tpu_custom_call.1} parent=63 // pred_fallthru
          _
      $region64: #{tpu_custom_call.1} parent=5 // pred_fallthru
        _
    $region6: #{tpu_custom_call.1} parent=1 // loop_footer
      %s21 = sadd.s32 1, %s17
    $region7: #{tpu_custom_call.1} parent=1 // loop_footer_branch
      %16 = sbr.rel target = $region3
    $region8: #{tpu_custom_call.1} parent=1 // loop_exit
      _
    %516 = vsyncpa [#allocation3], 1
    %s517 = scalar_lea.sflag [#allocation3], 1
    %518 = vsyncpa %s517, 1
    %519 = vsyncpa [#allocation5], 1

</llo_original>
